<compile_context>
chip_gen: v7x
topology: tpu7x:2x2x1
jax: 0.10.0
libtpu: 0.0.40
codegen_flags: <defaults>
</compile_context>

<pallas_src>
import functools

import jax
import jax.numpy as jnp
from jax.experimental import pallas as pl
from jax.experimental.pallas import tpu as pltpu

LANES = 128
MAX_TILE_ROWS = 4096     # (4096, 128) f32 block = 2 MiB; 8 MiB double-buffered
ACC_ROWS = 8             # per-split vector accumulator: one (8, 128) vreg


def _tensorcores_per_chip():
    """2 on dual-TensorCore chips (v7x), 1 on v5e/v6e; conservative default."""
    # TODO(synk): switch to pltpu.get_tpu_info() once a core-count field is
    # guaranteed; device_kind sniffing is enough to gate the v7x split.
    try:
        kind = jax.devices()[0].device_kind.lower()
    except Exception:
        return 1
    if "v7" in kind or kind.startswith("tpu7"):
        return 2
    return 1


def _focal_bce_partial_kernel(x_ref, t_ref, out_ref, *, from_logits, total,
                              tile_rows, n_steps, first_masked_blk,
                              mask_needed):
    split = pl.program_id(0)
    step = pl.program_id(1)
    blk = split * n_steps + step          # un-clamped global block index

    # Zero this split's accumulator at the start of its reduction axis.
    @pl.when(step == 0)
    def _init():
        out_ref[...] = jnp.zeros_like(out_ref)

    x = x_ref[...].astype(jnp.float32)
    t = t_ref[...].astype(jnp.float32)

    if from_logits:
        # Stable BCE-with-logits, softplus computed ONCE:
        #   softplus(-x) = softplus(x) - x
        # min(., 100) mirrors PyTorch's binary_cross_entropy -100 log clamp.
        sp = jnp.maximum(x, 0.0) + jnp.log1p(jnp.exp(-jnp.abs(x)))
        bce = ((1.0 - t) * jnp.minimum(sp, 100.0)
               + t * jnp.minimum(sp - x, 100.0))
    else:
        # F.binary_cross_entropy clamps log terms at -100 (PyTorch semantics).
        log_p = jnp.maximum(jnp.log(x), -100.0)
        log_1mp = jnp.maximum(jnp.log(1.0 - x), -100.0)
        bce = -(t * log_p + (1.0 - t) * log_1mp)

    # Fold (tile_rows, 128) -> (8, 128) with pure per-vreg VPU adds; the single
    # cross-lane reduce + focal transform happen once in the wrapper.
    def fold(v):
        return v.reshape(-1, ACC_ROWS, LANES).sum(axis=0)

    if mask_needed:
        # Only the last real block (and any duplicate clamped blocks) can hold
        # invalid elements; all earlier blocks take the unmasked fast path.
        @pl.when(blk >= first_masked_blk)
        def _masked():
            rid = jax.lax.broadcasted_iota(jnp.int32, (tile_rows, LANES), 0)
            cid = jax.lax.broadcasted_iota(jnp.int32, (tile_rows, LANES), 1)
            grow = blk * tile_rows + rid
            valid = (grow < total // LANES) | (
                (grow == total // LANES) & (cid < total % LANES))
            out_ref[...] += fold(jnp.where(valid, bce, 0.0))

        @pl.when(blk < first_masked_blk)
        def _unmasked():
            out_ref[...] += fold(bce)
    else:
        out_ref[...] += fold(bce)


def focal_loss(inputs, targets, alpha=0.8, gamma=2, from_logits=False,
               binary_targets=False):
    total = int(inputs.size)
    assert int(targets.size) == total and total > 0

    # Free, contiguous reshapes (no data movement); native dtypes kept in HBM
    # and upcast to f32 inside the kernel.
    x = jnp.ravel(inputs)
    y = jnp.ravel(targets)
    if binary_targets and jnp.dtype(y.dtype).itemsize > 2:
        # Exact for 0/1 targets; halves target HBM reads (fuses with producer).
        y = y.astype(jnp.bfloat16)

    rem = total % LANES
    if rem:
        # Rare ragged path: pad only to the next lane multiple so the 2-D view
        # exists; padded elements are masked out inside the kernel.
        pad = LANES - rem
        x = jnp.pad(x, (0, pad))
        y = jnp.pad(y, (0, pad))
    rows = (total + LANES - 1) // LANES

    # Sublane granularity: 8 for 32-bit, 16 for bf16, 32 for int8/fp8 inputs.
    min_itemsize = min(jnp.dtype(x.dtype).itemsize, jnp.dtype(y.dtype).itemsize)
    sub = max(ACC_ROWS, (8 * 4) // min_itemsize)

    splits = _tensorcores_per_chip()
    if rows < splits * sub:          # too small to be worth a core split
        splits = 1

    rows_per_split = -(-rows // splits)
    tile_rows = min(MAX_TILE_ROWS, -(-rows_per_split // sub) * sub)
    n_blocks = -(-rows // tile_rows)
    n_steps = -(-n_blocks // splits)

    x2 = x.reshape(rows, LANES)
    y2 = y.reshape(rows, LANES)

    kernel = functools.partial(
        _focal_bce_partial_kernel,
        from_logits=from_logits,
        total=total,
        tile_rows=tile_rows,
        n_steps=n_steps,
        first_masked_blk=total // (tile_rows * LANES),
        mask_needed=(splits * n_steps * tile_rows * LANES != total))

    # Clamp fully-out-of-range block indices (possible when splits * n_steps >
    # n_blocks); the duplicate block's contribution is masked to zero.
    def in_map(c, i):
        return (jnp.minimum(c * n_steps + i, n_blocks - 1), 0)

    bytes_accessed = (x2.size * jnp.dtype(x2.dtype).itemsize
                      + y2.size * jnp.dtype(y2.dtype).itemsize
                      + splits * ACC_ROWS * LANES * 4)
    cost = pl.CostEstimate(flops=10 * total, transcendentals=2 * total,
                           bytes_accessed=int(bytes_accessed))

    dim_sems = (pltpu.CORE_PARALLEL if splits > 1 else pltpu.ARBITRARY,
                pltpu.ARBITRARY)

    partials = pl.pallas_call(
        kernel,
        out_shape=jax.ShapeDtypeStruct((splits * ACC_ROWS, LANES),
                                       jnp.float32),
        grid_spec=pltpu.PrefetchScalarGridSpec(
            num_scalar_prefetch=0,
            grid=(splits, n_steps),
            in_specs=[
                pl.BlockSpec((tile_rows, LANES), in_map),
                pl.BlockSpec((tile_rows, LANES), in_map),
            ],
            out_specs=pl.BlockSpec((ACC_ROWS, LANES), lambda c, i: (c, 0)),
        ),
        compiler_params=pltpu.CompilerParams(
            dimension_semantics=dim_sems,
            vmem_limit_bytes=32 * 1024 * 1024),
        cost_estimate=cost,
    )(x2, y2)

    # Tiny scalar tail: cross-lane reduce of the partials + focal transform.
    mean_bce = jnp.sum(partials) / jnp.float32(total)
    bce_exp = jnp.exp(-mean_bce)
    return alpha * (1.0 - bce_exp) ** gamma * mean_bce


def focal_loss_ref(inputs, targets, alpha=0.8, gamma=2, from_logits=False):
    # Matches PyTorch: (optional sigmoid) -> BCE with -100 log clamp -> mean.
    p = jnp.ravel(inputs).astype(jnp.float32)
    t = jnp.ravel(targets).astype(jnp.float32)
    if from_logits:
        p = jax.nn.sigmoid(p)
    bce = -(t * jnp.maximum(jnp.log(p), -100.0)
            + (1.0 - t) * jnp.maximum(jnp.log(1.0 - p), -100.0))
    mean_bce = jnp.mean(bce)
    return alpha * (1.0 - jnp.exp(-mean_bce)) ** gamma * mean_bce


if __name__ == "__main__":
    key = jax.random.PRNGKey(0)
    k1, k2, k3, k4, k5 = jax.random.split(key, 5)
    N, C, H, W = 2, 4, 16, 16

    # 1) from_logits=False (module default): inputs are probabilities in (0,1),
    #    binary targets carried as bf16 inside the kernel (exact).
    inputs = jax.random.uniform(k1, (N, C, H, W), jnp.float32,
                                minval=0.05, maxval=0.95)
    targets = (jax.random.uniform(k2, (N, C, H, W), jnp.float32) > 0.5
               ).astype(jnp.float32)
    out = focal_loss(inputs, targets, alpha=0.8, gamma=2, from_logits=False,
                     binary_targets=True)
    out = jax.block_until_ready(out)
    ref = focal_loss_ref(inputs, targets, alpha=0.8, gamma=2,
                         from_logits=False)
    assert jnp.allclose(out, ref, rtol=1e-5, atol=1e-6), (out, ref)

    # 2) from_logits=True path (single-softplus / log1p formulation).
    logits = jax.random.normal(k3, (N, C, H, W), jnp.float32) * 2.0
    out_l = focal_loss(logits, targets, alpha=0.8, gamma=2, from_logits=True,
                       binary_targets=True)
    out_l = jax.block_until_ready(out_l)
    ref_l = focal_loss_ref(logits, targets, alpha=0.8, gamma=2,
                           from_logits=True)
    assert jnp.allclose(out_l, ref_l, rtol=1e-4, atol=1e-6), (out_l, ref_l)

    # 3) Ragged size (1001 elements, not a multiple of 128): exercises the
    #    in-kernel tail mask.
    r_in = jax.random.uniform(k4, (7, 11, 13), jnp.float32,
                              minval=0.05, maxval=0.95)
    r_tg = (jax.random.uniform(k5, (7, 11, 13), jnp.float32) > 0.5
            ).astype(jnp.float32)
    out_r = focal_loss(r_in, r_tg, alpha=0.8, gamma=2, from_logits=False)
    out_r = jax.block_until_ready(out_r)
    ref_r = focal_loss_ref(r_in, r_tg, alpha=0.8, gamma=2, from_logits=False)
    assert jnp.allclose(out_r, ref_r, rtol=1e-5, atol=1e-6), (out_r, ref_r)

    print("KERNEL_OK")
</pallas_src>

<mosaic_0001>
module attributes {stable_mosaic.version = 11 : i64} {
  func.func @_focal_bce_partial_kernel(%arg0: i32, %arg1: i32, %arg2: memref<16x128xf32, #tpu.memory_space<vmem>>, %arg3: memref<16x128xbf16, #tpu.memory_space<vmem>>, %arg4: memref<8x128xf32, #tpu.memory_space<vmem>>) attributes {dimension_semantics = [#tpu.dimension_semantics<arbitrary>, #tpu.dimension_semantics<arbitrary>], iteration_bounds = array<i64: 1, 1>, scalar_prefetch = 0 : i64, scratch_operands = 0 : i64, tpu.core_type = #tpu.core_type<tc>, window_params = [{transform_indices = @transform_0, window_bounds = array<i64: 16, 128>}, {transform_indices = @transform_1, window_bounds = array<i64: 16, 128>}, {transform_indices = @transform_2, window_bounds = array<i64: 8, 128>}]} {
    %c0_i32 = arith.constant 0 : i32
    %0 = arith.cmpi eq, %arg1, %c0_i32 : i32
    %1 = arith.extui %0 : i1 to i32
    %c0_i32_0 = arith.constant 0 : i32
    %2 = arith.cmpi ne, %1, %c0_i32_0 : i32
    scf.if %2 {
      %cst_13 = arith.constant 0.000000e+00 : f32
      %26 = vector.broadcast %cst_13 : f32 to vector<8x128xf32>
      %c0_14 = arith.constant 0 : index
      %c0_15 = arith.constant 0 : index
      %27 = vector.load %arg4[%c0_14, %c0_15] : memref<8x128xf32, #tpu.memory_space<vmem>>, vector<8x128xf32>
      tpu.vector_store %arg4[%c0_14, %c0_15], %26 {strides = array<i32>} : memref<8x128xf32, #tpu.memory_space<vmem>>, vector<8x128xf32>,
    } else {
    }
    %c0 = arith.constant 0 : index
    %c0_1 = arith.constant 0 : index
    %3 = vector.load %arg2[%c0, %c0_1] : memref<16x128xf32, #tpu.memory_space<vmem>>, vector<16x128xf32>
    %c0_2 = arith.constant 0 : index
    %c0_3 = arith.constant 0 : index
    %4 = vector.load %arg3[%c0_2, %c0_3] : memref<16x128xbf16, #tpu.memory_space<vmem>>, vector<16x128xbf16>
    %5 = arith.extf %4 : vector<16x128xbf16> to vector<16x128xf32>
    %6 = math.log %3 : vector<16x128xf32>
    %cst = arith.constant -1.000000e+02 : f32
    %7 = vector.broadcast %cst : f32 to vector<16x128xf32>
    %8 = arith.maximumf %6, %7 : vector<16x128xf32>
    %cst_4 = arith.constant 1.000000e+00 : f32
    %9 = vector.broadcast %cst_4 : f32 to vector<16x128xf32>
    %10 = arith.subf %9, %3 : vector<16x128xf32>
    %11 = math.log %10 : vector<16x128xf32>
    %cst_5 = arith.constant -1.000000e+02 : f32
    %12 = vector.broadcast %cst_5 : f32 to vector<16x128xf32>
    %13 = arith.maximumf %11, %12 : vector<16x128xf32>
    %14 = arith.mulf %5, %8 : vector<16x128xf32>
    %cst_6 = arith.constant 1.000000e+00 : f32
    %15 = vector.broadcast %cst_6 : f32 to vector<16x128xf32>
    %16 = arith.subf %15, %5 : vector<16x128xf32>
    %17 = arith.mulf %16, %13 : vector<16x128xf32>
    %18 = arith.addf %14, %17 : vector<16x128xf32>
    %cst_7 = arith.constant 0.000000e+00 : f32
    %19 = vector.broadcast %cst_7 : f32 to vector<16x128xf32>
    %20 = arith.subf %19, %18 : vector<16x128xf32>
    %c0_8 = arith.constant 0 : index
    %c0_9 = arith.constant 0 : index
    %21 = vector.load %arg4[%c0_8, %c0_9] : memref<8x128xf32, #tpu.memory_space<vmem>>, vector<8x128xf32>
    %22 = vector.shape_cast %20 : vector<16x128xf32> to vector<2x8x128xf32>
    %cst_10 = arith.constant dense<0.000000e+00> : vector<8x128xf32>
    %23 = vector.multi_reduction <add>, %22, %cst_10 [0] : vector<2x8x128xf32> to vector<8x128xf32>
    %24 = arith.addf %21, %23 : vector<8x128xf32>
    %c0_11 = arith.constant 0 : index
    %c0_12 = arith.constant 0 : index
    %25 = vector.load %arg4[%c0_11, %c0_12] : memref<8x128xf32, #tpu.memory_space<vmem>>, vector<8x128xf32>
    tpu.vector_store %arg4[%c0_11, %c0_12], %24 {strides = array<i32>} : memref<8x128xf32, #tpu.memory_space<vmem>>, vector<8x128xf32>,
    return
  }
  func.func @transform_0(%arg0: i32, %arg1: i32) -> (i32, i32) {
    %c1_i32 = arith.constant 1 : i32
    %0 = arith.muli %arg0, %c1_i32 : i32
    %1 = arith.addi %0, %arg1 : i32
    %c0_i32 = arith.constant 0 : i32
    %2 = arith.minsi %1, %c0_i32 : i32
    %c0_i32_0 = arith.constant 0 : i32
    %c0_i32_1 = arith.constant 0 : i32
    return %2, %c0_i32_0 : i32, i32
  }
  func.func @transform_1(%arg0: i32, %arg1: i32) -> (i32, i32) {
    %c1_i32 = arith.constant 1 : i32
    %0 = arith.muli %arg0, %c1_i32 : i32
    %1 = arith.addi %0, %arg1 : i32
    %c0_i32 = arith.constant 0 : i32
    %2 = arith.minsi %1, %c0_i32 : i32
    %c0_i32_0 = arith.constant 0 : i32
    %c0_i32_1 = arith.constant 0 : i32
    return %2, %c0_i32_0 : i32, i32
  }
  func.func @transform_2(%arg0: i32, %arg1: i32) -> (i32, i32) {
    %c0_i32 = arith.constant 0 : i32
    %c0_i32_0 = arith.constant 0 : i32
    return %arg0, %c0_i32 : i32, i32
  }
}

</mosaic_0001>

<llo_original>
// kernel: tpu_custom_call.1
$region0: #{tpu_custom_call.1}
  #allocation0 [shape = 'u32[]', space=smem, size = 0x4, offset = 0x4, fixed_abs, tag = 'smem constant byte address 0x4 - core index']
  #allocation1 [shape = 'u32[144,128]{1,0:T(1,128)}', space=vmem, size = 0x12000, scoped, tag = 'internal scratch']
  %s0 = inlined_call_operand.hbm [shape: f32[16,128], index: 0, kind: input, shape index: {}]
  %s1 = inlined_call_operand.hbm [shape: bf16[16,128], index: 1, kind: input, shape index: {}]
  %s2 = inlined_call_operand.hbm [shape: f32[8,128], index: 2, kind: output, shape index: {}]
  %s3 = sld [smem:[#allocation0]]
  $region30: #{tpu_custom_call.1} parent=0
    _
  %s5 = ssub.s32 1, %s3
  %s6 = scalar_select 0, %s5, %s3
  $region1: #{tpu_custom_call.1} parent=0
    #allocation2 [shape = 'u8[8192]{0}', space=vmem, size = 0x2000, scoped, tag = 'input window, operand 0, single buffered']
    #allocation3 [shape = 's32[1]{0}', space=sflag, size = 0x4, scoped, tag = 'scoped memory for tpu_custom_call.1']
    #allocation4 [shape = 's32[1]{0}', space=sflag, size = 0x4, scoped, tag = 'scoped memory for tpu_custom_call.1']
    #allocation5 [shape = 'u8[4096]{0}', space=vmem, size = 0x1000, scoped, tag = 'input window, operand 1, single buffered']
    #allocation6 [shape = 's32[1]{0}', space=sflag, size = 0x4, scoped, tag = 'scoped memory for tpu_custom_call.1']
    #allocation7 [shape = 'u8[4096]{0}', space=vmem, size = 0x1000, scoped, tag = 'output window, operand 0, single buffered']
    %7 = vsyncpa [#allocation3], 0
    %8 = vsyncpa [#allocation6], 0
    %9 = vsyncpa [#allocation4], 0
    // Predicated region
    $region2: #{tpu_custom_call.1} parent=1 // pred_check
      _
    $region3: #{tpu_custom_call.1} parent=1 // pred_check_branch
      %11 = sbr.rel (0) target = $region5
    $region4: #{tpu_custom_call.1} parent=1 // pred_region
      %s12 = sadd.s32 0, 0
      %p13 = scmp.lt.s32.totalorder %s12, 0
      %s14 = scalar_select %p13, %s12, 0
      %s15 = smul.u32 2, %s14
      %s17 = ssub.s32 256, 256
      %18 = vsyncadd [#allocation3], %s17
      %s19 = smul.addr %s15, 128
      %s20 = scalar_lea.hbm %s0, %s19
      %s21 = sshll.u32 [#allocation2], 4
      %s22 = int_to_ptr.vmem [resolvable:$true] %s21
      %27 = dma.hbm_to_vmem [thread:$0]  %s20, 256, %s22, [#allocation3], 128, 128, 8
    $region5: #{tpu_custom_call.1} parent=1 // pred_fallthru
      _
    // Predicated region
    $region6: #{tpu_custom_call.1} parent=1 // pred_check
      _
    $region7: #{tpu_custom_call.1} parent=1 // pred_check_branch
      %29 = sbr.rel (0) target = $region9
    $region8: #{tpu_custom_call.1} parent=1 // pred_region
      %s30 = sadd.s32 0, 0
      %p31 = scmp.lt.s32.totalorder %s30, 0
      %s32 = scalar_select %p31, %s30, 0
      %s33 = smul.u32 2, %s32
      %s35 = ssub.s32 128, 128
      %36 = vsyncadd [#allocation6], %s35
      %s37 = smul.addr %s33, 64
      %s38 = scalar_lea.hbm %s1, %s37
      %s39 = sshll.u32 [#allocation5], 4
      %s40 = int_to_ptr.vmem [resolvable:$true] %s39
      %45 = dma.hbm_to_vmem [thread:$0]  %s38, 128, %s40, [#allocation6], 64, 64, 4
    $region9: #{tpu_custom_call.1} parent=1 // pred_fallthru
      _
    // Predicated region
    $region10: #{tpu_custom_call.1} parent=1 // pred_check
      _
    $region11: #{tpu_custom_call.1} parent=1 // pred_check_branch
      %47 = sbr.rel (0) target = $region13
    $region12: #{tpu_custom_call.1} parent=1 // pred_region
      %48 = dma.done [#allocation3], 256
    $region13: #{tpu_custom_call.1} parent=1 // pred_fallthru
      _
    // Predicated region
    $region14: #{tpu_custom_call.1} parent=1 // pred_check
      _
    $region15: #{tpu_custom_call.1} parent=1 // pred_check_branch
      %50 = sbr.rel (0) target = $region17
    $region16: #{tpu_custom_call.1} parent=1 // pred_region
      %51 = dma.done [#allocation6], 128
    $region17: #{tpu_custom_call.1} parent=1 // pred_fallthru
      _
    %s52 = sadd.s32 0, 0
    %p53 = scmp.lt.s32.totalorder %s52, 0
    %s54 = scalar_select %p53, %s52, 0
    %s55 = smul.u32 2, %s54
    %s56 = sadd.s32 0, 0
    %p57 = scmp.lt.s32.totalorder %s56, 0
    %s58 = scalar_select %p57, %s56, 0
    %s59 = smul.u32 2, %s58
    %p60 = scmp.eq.s32.totalorder 0, 0
    // Predicated region
    $region18: #{tpu_custom_call.1} parent=1 // pred_check
      %p61 = pneg %p60
    $region19: #{tpu_custom_call.1} parent=1 // pred_check_branch
      %63 = sbr.rel (%p61) target = $region21
    $region20: #{tpu_custom_call.1} parent=1 // pred_region
      %64 = vst [vmem:[#allocation7] sm:$0xff] 0.0
    $region21: #{tpu_custom_call.1} parent=1 // pred_fallthru
      _
    %v65 = vld [vmem:[#allocation2] sm:$0xff]
    %v66 = vld [vmem:[#allocation2 + $0x8] sm:$0xff]
    %v67 = vld [vmem:[#allocation5] sm:$0xf]
    %v68 = vld [vmem:[#allocation5 + $0x4] sm:$0xf]
    %v69 = vunpack.c.l.bf16 %v67
    %v70 = vunpack.c.l.bf16 %v68
    %v71 = vlog2.pop %v65
    %v72 = vmul.f32 %v71, 0.6931472
    %v73 = vlog2.pop %v66
    %v74 = vmul.f32 %v73, 0.6931472
    %v75 = vmax.f32 %v72, -100.0
    %v76 = vmax.f32 %v74, -100.0
    %v77 = vsub.f32 1.0, %v65
    %v78 = vsub.f32 1.0, %v66
    %v79 = vlog2.pop %v77
    %v80 = vmul.f32 %v79, 0.6931472
    %v81 = vlog2.pop %v78
    %v82 = vmul.f32 %v81, 0.6931472
    %v83 = vmax.f32 %v80, -100.0
    %v84 = vmax.f32 %v82, -100.0
    %v85 = vmul.f32 %v69, %v75
    %v86 = vmul.f32 %v70, %v76
    %v87 = vsub.f32 1.0, %v69
    %v88 = vsub.f32 1.0, %v70
    %v89 = vmul.f32 %v87, %v83
    %v90 = vmul.f32 %v88, %v84
    %v91 = vadd.f32 %v85, %v89
    %v92 = vadd.f32 %v86, %v90
    %v93 = vsub.f32 0.0, %v91
    %v94 = vsub.f32 0.0, %v92
    %v95 = vld [vmem:[#allocation7] sm:$0xff]
    %v96 = vadd.f32 %v93, %v94
    %v97 = vadd.f32 %v95, %v96
    %98 = vst [vmem:[#allocation7] sm:$0xff] %v97
    // Predicated region
    $region22: #{tpu_custom_call.1} parent=1 // pred_check
      _
    $region23: #{tpu_custom_call.1} parent=1 // pred_check_branch
      %100 = sbr.rel (0) target = $region25
    $region24: #{tpu_custom_call.1} parent=1 // pred_region
      %s102 = ssub.s32 128, 128
      %103 = vsyncadd [#allocation4], %s102
      %s105 = sshll.u32 [#allocation7], 4
      %s106 = int_to_ptr.vmem [resolvable:$true] %s105
      %108 = dma.vmem_to_hbm [thread:$0]  %s106, 128, %s2, [#allocation4]
    $region25: #{tpu_custom_call.1} parent=1 // pred_fallthru
      _
    // Predicated region
    $region26: #{tpu_custom_call.1} parent=1 // pred_check
      _
    $region27: #{tpu_custom_call.1} parent=1 // pred_check_branch
      %110 = sbr.rel (0) target = $region29
    $region28: #{tpu_custom_call.1} parent=1 // pred_region
      %111 = dma.done [#allocation4], 128
    $region29: #{tpu_custom_call.1} parent=1 // pred_fallthru
      _
    %112 = vsyncpa [#allocation3], 1
    %113 = vsyncpa [#allocation6], 1
    %114 = vsyncpa [#allocation4], 1

</llo_original>
